<compile_context>
chip_gen: v5e
topology: v5e:2x2
jax: 0.10.0
libtpu: 0.0.40
codegen_flags: <defaults>
</compile_context>

<pallas_src>
import jax
import jax.numpy as jnp
from jax.experimental import pallas as pl
from jax.experimental.pallas import tpu as pltpu

_LANES = 128                 # lane (last) dim of the 2-D spatial slab
_TARGET_IN_BYTES = 4 << 20   # ~4 MiB of input per grid step


def _outconv_kernel(w_ref, b_ref, x_ref, o_ref):
    # w_ref: (C_out, C_in) SMEM scalars, b_ref: (C_out,) SMEM scalars
    # x_ref: (C_in, R, 128) VMEM,  o_ref: (C_out, R, 128) VMEM
    c_out, c_in = w_ref.shape
    for co in range(c_out):                       # tiny, fully unrolled
        # Bias fused into the first broadcast-FMA; f32 accumulation.
        acc = x_ref[0].astype(jnp.float32) * w_ref[co, 0] + b_ref[co]
        for ci in range(1, c_in):
            acc = acc + x_ref[ci].astype(jnp.float32) * w_ref[co, ci]
        # Full-vreg slabs -> sigmoid's exp goes to the EUP on 1024-elem tiles;
        # stores are unmasked full-lane vsts.
        o_ref[co] = jax.nn.sigmoid(acc).astype(o_ref.dtype)


def _round_up(a, b):
    return (a + b - 1) // b * b


def _pick_row_block(rows, c_in, itemsize):
    """Rows per grid step: ~_TARGET_IN_BYTES of input, multiple of 8, <= rows."""
    r = _TARGET_IN_BYTES // (c_in * _LANES * itemsize)
    r = max(8, (r // 8) * 8)
    if r >= rows:
        return rows            # full extent (always a legal block dim)
    return r


@jax.jit
def outconv_forward(x_nchw, weight, bias):
    """sigmoid(Conv2d(kernel_size=1)(x)) with PyTorch NCHW semantics.

    Args:
      x_nchw: (N, C_in, H, W) float32
      weight: (C_out, C_in, 1, 1) float32  (nn.Conv2d weight)
      bias:   (C_out,) float32
    Returns:
      (N, C_out, H, W) float32
    """
    N, C_in, H, W = x_nchw.shape
    C_out = weight.shape[0]
    HW = H * W

    # Flatten spatial (free contiguous merge), pad lanes to a multiple of 128
    # only if needed (rare; one extra streaming pass in that case).
    x_flat = x_nchw.reshape(N, C_in, HW)
    HW_pad = _round_up(HW, _LANES)
    if HW_pad != HW:
        x_flat = jnp.pad(x_flat, ((0, 0), (0, 0), (0, HW_pad - HW)))
    rows = HW_pad // _LANES
    x4 = x_flat.reshape(N, C_in, rows, _LANES)     # free split of last dim
    w2d = weight.reshape(C_out, C_in)

    itemsize = jnp.dtype(x_nchw.dtype).itemsize
    r_blk = _pick_row_block(rows, C_in, itemsize)
    # Spatial row-blocks first so v7x megacore shards them even when N is tiny.
    grid = (pl.cdiv(rows, r_blk), N)

    out4 = pl.pallas_call(
        _outconv_kernel,
        out_shape=jax.ShapeDtypeStruct((N, C_out, rows, _LANES), x_nchw.dtype),
        grid_spec=pltpu.PrefetchScalarGridSpec(
            num_scalar_prefetch=0,
            grid=grid,
            in_specs=[
                # Weights / bias resident in SMEM as scalars.
                pl.BlockSpec(memory_space=pltpu.MemorySpace.SMEM),
                pl.BlockSpec(memory_space=pltpu.MemorySpace.SMEM),
                # One image's channels x a (r_blk, 128) full-sublane slab.
                pl.BlockSpec((None, C_in, r_blk, _LANES),
                             lambda r, n: (n, 0, r, 0)),
            ],
            out_specs=pl.BlockSpec((None, C_out, r_blk, _LANES),
                                   lambda r, n: (n, 0, r, 0)),
        ),
        compiler_params=pltpu.CompilerParams(
            dimension_semantics=("parallel", "parallel"),
            # In + out blocks double-buffered = ~14 MiB at the 4 MiB target;
            # raise v5e's 16 MiB default, stays <= defaults on v6e/v7x.
            vmem_limit_bytes=32 * 1024 * 1024),
    )(w2d, bias, x4)

    out_flat = out4.reshape(N, C_out, HW_pad)
    if HW_pad != HW:
        out_flat = out_flat[:, :, :HW]
    return out_flat.reshape(N, C_out, H, W)


if __name__ == "__main__":
    # Small shapes consistent with the module: N=2, C_in=4, H=W=16, C_out=3.
    N, C_in, H, W = 2, 4, 16, 16
    C_out = 3

    key = jax.random.PRNGKey(0)
    kx, kw, kb = jax.random.split(key, 3)

    x = jax.random.normal(kx, (N, C_in, H, W), dtype=jnp.float32)
    # nn.Conv2d(kernel_size=1) weight has shape (C_out, C_in, 1, 1).
    weight = jax.random.normal(kw, (C_out, C_in, 1, 1), dtype=jnp.float32) * 0.1
    bias = jax.random.normal(kb, (C_out,), dtype=jnp.float32) * 0.1

    out = outconv_forward(x, weight, bias)
    out = jax.block_until_ready(out)

    # Pure-JAX reference: 1x1 conv == channel matmul, then sigmoid.
    ref = jax.nn.sigmoid(
        jnp.einsum("nchw,oc->nohw", x, weight.reshape(C_out, C_in))
        + bias[None, :, None, None])
    assert out.shape == (N, C_out, H, W)
    assert jnp.allclose(out, ref, atol=1e-5, rtol=1e-5)

    print("KERNEL_OK")
</pallas_src>

<mosaic_0001>
module attributes {stable_mosaic.version = 11 : i64} {
  func.func @_outconv_kernel(%arg0: i32, %arg1: i32, %arg2: memref<3x4xf32, #tpu.memory_space<smem>>, %arg3: memref<3xf32, #tpu.memory_space<smem>>, %arg4: memref<1x4x2x128xf32, #tpu.memory_space<vmem>>, %arg5: memref<1x3x2x128xf32, #tpu.memory_space<vmem>>) attributes {dimension_semantics = [#tpu.dimension_semantics<parallel>, #tpu.dimension_semantics<parallel>], iteration_bounds = array<i64: 1, 2>, scalar_prefetch = 0 : i64, scratch_operands = 0 : i64, tpu.core_type = #tpu.core_type<tc>, window_params = [{transform_indices = @transform_0, window_bounds = array<i64: 3, 4>}, {transform_indices = @transform_1, window_bounds = array<i64: 3>}, {transform_indices = @transform_2, window_bounds = array<i64: 1, 4, 2, 128>}, {transform_indices = @transform_3, window_bounds = array<i64: 1, 3, 2, 128>}]} {
    %c0 = arith.constant 0 : index
    %c0_0 = arith.constant 0 : index
    %c0_1 = arith.constant 0 : index
    %c0_2 = arith.constant 0 : index
    %0 = vector.load %arg4[%c0, %c0_0, %c0_1, %c0_2] : memref<1x4x2x128xf32, #tpu.memory_space<vmem>>, vector<1x1x2x128xf32>
    %1 = vector.shape_cast %0 : vector<1x1x2x128xf32> to vector<2x128xf32>
    %c0_3 = arith.constant 0 : index
    %c0_4 = arith.constant 0 : index
    %2 = memref.load %arg2[%c0_3, %c0_4] : memref<3x4xf32, #tpu.memory_space<smem>>
    %3 = vector.broadcast %2 : f32 to vector<2x128xf32>
    %4 = arith.mulf %1, %3 : vector<2x128xf32>
    %c0_5 = arith.constant 0 : index
    %5 = memref.load %arg3[%c0_5] : memref<3xf32, #tpu.memory_space<smem>>
    %6 = vector.broadcast %5 : f32 to vector<2x128xf32>
    %7 = arith.addf %4, %6 : vector<2x128xf32>
    %c0_6 = arith.constant 0 : index
    %c1 = arith.constant 1 : index
    %c0_7 = arith.constant 0 : index
    %c0_8 = arith.constant 0 : index
    %8 = vector.load %arg4[%c0_6, %c1, %c0_7, %c0_8] : memref<1x4x2x128xf32, #tpu.memory_space<vmem>>, vector<1x1x2x128xf32>
    %9 = vector.shape_cast %8 : vector<1x1x2x128xf32> to vector<2x128xf32>
    %c0_9 = arith.constant 0 : index
    %c1_10 = arith.constant 1 : index
    %10 = memref.load %arg2[%c0_9, %c1_10] : memref<3x4xf32, #tpu.memory_space<smem>>
    %11 = vector.broadcast %10 : f32 to vector<2x128xf32>
    %12 = arith.mulf %9, %11 : vector<2x128xf32>
    %13 = arith.addf %7, %12 : vector<2x128xf32>
    %c0_11 = arith.constant 0 : index
    %c2 = arith.constant 2 : index
    %c0_12 = arith.constant 0 : index
    %c0_13 = arith.constant 0 : index
    %14 = vector.load %arg4[%c0_11, %c2, %c0_12, %c0_13] : memref<1x4x2x128xf32, #tpu.memory_space<vmem>>, vector<1x1x2x128xf32>
    %15 = vector.shape_cast %14 : vector<1x1x2x128xf32> to vector<2x128xf32>
    %c0_14 = arith.constant 0 : index
    %c2_15 = arith.constant 2 : index
    %16 = memref.load %arg2[%c0_14, %c2_15] : memref<3x4xf32, #tpu.memory_space<smem>>
    %17 = vector.broadcast %16 : f32 to vector<2x128xf32>
    %18 = arith.mulf %15, %17 : vector<2x128xf32>
    %19 = arith.addf %13, %18 : vector<2x128xf32>
    %c0_16 = arith.constant 0 : index
    %c3 = arith.constant 3 : index
    %c0_17 = arith.constant 0 : index
    %c0_18 = arith.constant 0 : index
    %20 = vector.load %arg4[%c0_16, %c3, %c0_17, %c0_18] : memref<1x4x2x128xf32, #tpu.memory_space<vmem>>, vector<1x1x2x128xf32>
    %21 = vector.shape_cast %20 : vector<1x1x2x128xf32> to vector<2x128xf32>
    %c0_19 = arith.constant 0 : index
    %c3_20 = arith.constant 3 : index
    %22 = memref.load %arg2[%c0_19, %c3_20] : memref<3x4xf32, #tpu.memory_space<smem>>
    %23 = vector.broadcast %22 : f32 to vector<2x128xf32>
    %24 = arith.mulf %21, %23 : vector<2x128xf32>
    %25 = arith.addf %19, %24 : vector<2x128xf32>
    %26 = arith.negf %25 : vector<2x128xf32>
    %27 = math.exp %26 : vector<2x128xf32>
    %cst = arith.constant 1.000000e+00 : f32
    %28 = vector.broadcast %cst : f32 to vector<2x128xf32>
    %29 = arith.addf %28, %27 : vector<2x128xf32>
    %30 = arith.divf %28, %29 : vector<2x128xf32>
    %c0_21 = arith.constant 0 : index
    %c0_22 = arith.constant 0 : index
    %c0_23 = arith.constant 0 : index
    %c0_24 = arith.constant 0 : index
    %31 = vector.load %arg5[%c0_21, %c0_22, %c0_23, %c0_24] : memref<1x3x2x128xf32, #tpu.memory_space<vmem>>, vector<1x1x2x128xf32>
    %32 = vector.shape_cast %31 : vector<1x1x2x128xf32> to vector<2x128xf32>
    %33 = vector.shape_cast %30 : vector<2x128xf32> to vector<1x1x2x128xf32>
    tpu.vector_store %arg5[%c0_21, %c0_22, %c0_23, %c0_24], %33 {strides = array<i32>} : memref<1x3x2x128xf32, #tpu.memory_space<vmem>>, vector<1x1x2x128xf32>,
    %c0_25 = arith.constant 0 : index
    %c0_26 = arith.constant 0 : index
    %c0_27 = arith.constant 0 : index
    %c0_28 = arith.constant 0 : index
    %34 = vector.load %arg4[%c0_25, %c0_26, %c0_27, %c0_28] : memref<1x4x2x128xf32, #tpu.memory_space<vmem>>, vector<1x1x2x128xf32>
    %35 = vector.shape_cast %34 : vector<1x1x2x128xf32> to vector<2x128xf32>
    %c1_29 = arith.constant 1 : index
    %c0_30 = arith.constant 0 : index
    %36 = memref.load %arg2[%c1_29, %c0_30] : memref<3x4xf32, #tpu.memory_space<smem>>
    %37 = vector.broadcast %36 : f32 to vector<2x128xf32>
    %38 = arith.mulf %35, %37 : vector<2x128xf32>
    %c1_31 = arith.constant 1 : index
    %39 = memref.load %arg3[%c1_31] : memref<3xf32, #tpu.memory_space<smem>>
    %40 = vector.broadcast %39 : f32 to vector<2x128xf32>
    %41 = arith.addf %38, %40 : vector<2x128xf32>
    %c0_32 = arith.constant 0 : index
    %c1_33 = arith.constant 1 : index
    %c0_34 = arith.constant 0 : index
    %c0_35 = arith.constant 0 : index
    %42 = vector.load %arg4[%c0_32, %c1_33, %c0_34, %c0_35] : memref<1x4x2x128xf32, #tpu.memory_space<vmem>>, vector<1x1x2x128xf32>
    %43 = vector.shape_cast %42 : vector<1x1x2x128xf32> to vector<2x128xf32>
    %c1_36 = arith.constant 1 : index
    %c1_37 = arith.constant 1 : index
    %44 = memref.load %arg2[%c1_36, %c1_37] : memref<3x4xf32, #tpu.memory_space<smem>>
    %45 = vector.broadcast %44 : f32 to vector<2x128xf32>
    %46 = arith.mulf %43, %45 : vector<2x128xf32>
    %47 = arith.addf %41, %46 : vector<2x128xf32>
    %c0_38 = arith.constant 0 : index
    %c2_39 = arith.constant 2 : index
    %c0_40 = arith.constant 0 : index
    %c0_41 = arith.constant 0 : index
    %48 = vector.load %arg4[%c0_38, %c2_39, %c0_40, %c0_41] : memref<1x4x2x128xf32, #tpu.memory_space<vmem>>, vector<1x1x2x128xf32>
    %49 = vector.shape_cast %48 : vector<1x1x2x128xf32> to vector<2x128xf32>
    %c1_42 = arith.constant 1 : index
    %c2_43 = arith.constant 2 : index
    %50 = memref.load %arg2[%c1_42, %c2_43] : memref<3x4xf32, #tpu.memory_space<smem>>
    %51 = vector.broadcast %50 : f32 to vector<2x128xf32>
    %52 = arith.mulf %49, %51 : vector<2x128xf32>
    %53 = arith.addf %47, %52 : vector<2x128xf32>
    %c0_44 = arith.constant 0 : index
    %c3_45 = arith.constant 3 : index
    %c0_46 = arith.constant 0 : index
    %c0_47 = arith.constant 0 : index
    %54 = vector.load %arg4[%c0_44, %c3_45, %c0_46, %c0_47] : memref<1x4x2x128xf32, #tpu.memory_space<vmem>>, vector<1x1x2x128xf32>
    %55 = vector.shape_cast %54 : vector<1x1x2x128xf32> to vector<2x128xf32>
    %c1_48 = arith.constant 1 : index
    %c3_49 = arith.constant 3 : index
    %56 = memref.load %arg2[%c1_48, %c3_49] : memref<3x4xf32, #tpu.memory_space<smem>>
    %57 = vector.broadcast %56 : f32 to vector<2x128xf32>
    %58 = arith.mulf %55, %57 : vector<2x128xf32>
    %59 = arith.addf %53, %58 : vector<2x128xf32>
    %60 = arith.negf %59 : vector<2x128xf32>
    %61 = math.exp %60 : vector<2x128xf32>
    %cst_50 = arith.constant 1.000000e+00 : f32
    %62 = vector.broadcast %cst_50 : f32 to vector<2x128xf32>
    %63 = arith.addf %62, %61 : vector<2x128xf32>
    %64 = arith.divf %62, %63 : vector<2x128xf32>
    %c0_51 = arith.constant 0 : index
    %c1_52 = arith.constant 1 : index
    %c0_53 = arith.constant 0 : index
    %c0_54 = arith.constant 0 : index
    %65 = vector.load %arg5[%c0_51, %c1_52, %c0_53, %c0_54] : memref<1x3x2x128xf32, #tpu.memory_space<vmem>>, vector<1x1x2x128xf32>
    %66 = vector.shape_cast %65 : vector<1x1x2x128xf32> to vector<2x128xf32>
    %67 = vector.shape_cast %64 : vector<2x128xf32> to vector<1x1x2x128xf32>
    tpu.vector_store %arg5[%c0_51, %c1_52, %c0_53, %c0_54], %67 {strides = array<i32>} : memref<1x3x2x128xf32, #tpu.memory_space<vmem>>, vector<1x1x2x128xf32>,
    %c0_55 = arith.constant 0 : index
    %c0_56 = arith.constant 0 : index
    %c0_57 = arith.constant 0 : index
    %c0_58 = arith.constant 0 : index
    %68 = vector.load %arg4[%c0_55, %c0_56, %c0_57, %c0_58] : memref<1x4x2x128xf32, #tpu.memory_space<vmem>>, vector<1x1x2x128xf32>
    %69 = vector.shape_cast %68 : vector<1x1x2x128xf32> to vector<2x128xf32>
    %c2_59 = arith.constant 2 : index
    %c0_60 = arith.constant 0 : index
    %70 = memref.load %arg2[%c2_59, %c0_60] : memref<3x4xf32, #tpu.memory_space<smem>>
    %71 = vector.broadcast %70 : f32 to vector<2x128xf32>
    %72 = arith.mulf %69, %71 : vector<2x128xf32>
    %c2_61 = arith.constant 2 : index
    %73 = memref.load %arg3[%c2_61] : memref<3xf32, #tpu.memory_space<smem>>
    %74 = vector.broadcast %73 : f32 to vector<2x128xf32>
    %75 = arith.addf %72, %74 : vector<2x128xf32>
    %c0_62 = arith.constant 0 : index
    %c1_63 = arith.constant 1 : index
    %c0_64 = arith.constant 0 : index
    %c0_65 = arith.constant 0 : index
    %76 = vector.load %arg4[%c0_62, %c1_63, %c0_64, %c0_65] : memref<1x4x2x128xf32, #tpu.memory_space<vmem>>, vector<1x1x2x128xf32>
    %77 = vector.shape_cast %76 : vector<1x1x2x128xf32> to vector<2x128xf32>
    %c2_66 = arith.constant 2 : index
    %c1_67 = arith.constant 1 : index
    %78 = memref.load %arg2[%c2_66, %c1_67] : memref<3x4xf32, #tpu.memory_space<smem>>
    %79 = vector.broadcast %78 : f32 to vector<2x128xf32>
    %80 = arith.mulf %77, %79 : vector<2x128xf32>
    %81 = arith.addf %75, %80 : vector<2x128xf32>
    %c0_68 = arith.constant 0 : index
    %c2_69 = arith.constant 2 : index
    %c0_70 = arith.constant 0 : index
    %c0_71 = arith.constant 0 : index
    %82 = vector.load %arg4[%c0_68, %c2_69, %c0_70, %c0_71] : memref<1x4x2x128xf32, #tpu.memory_space<vmem>>, vector<1x1x2x128xf32>
    %83 = vector.shape_cast %82 : vector<1x1x2x128xf32> to vector<2x128xf32>
    %c2_72 = arith.constant 2 : index
    %c2_73 = arith.constant 2 : index
    %84 = memref.load %arg2[%c2_72, %c2_73] : memref<3x4xf32, #tpu.memory_space<smem>>
    %85 = vector.broadcast %84 : f32 to vector<2x128xf32>
    %86 = arith.mulf %83, %85 : vector<2x128xf32>
    %87 = arith.addf %81, %86 : vector<2x128xf32>
    %c0_74 = arith.constant 0 : index
    %c3_75 = arith.constant 3 : index
    %c0_76 = arith.constant 0 : index
    %c0_77 = arith.constant 0 : index
    %88 = vector.load %arg4[%c0_74, %c3_75, %c0_76, %c0_77] : memref<1x4x2x128xf32, #tpu.memory_space<vmem>>, vector<1x1x2x128xf32>
    %89 = vector.shape_cast %88 : vector<1x1x2x128xf32> to vector<2x128xf32>
    %c2_78 = arith.constant 2 : index
    %c3_79 = arith.constant 3 : index
    %90 = memref.load %arg2[%c2_78, %c3_79] : memref<3x4xf32, #tpu.memory_space<smem>>
    %91 = vector.broadcast %90 : f32 to vector<2x128xf32>
    %92 = arith.mulf %89, %91 : vector<2x128xf32>
    %93 = arith.addf %87, %92 : vector<2x128xf32>
    %94 = arith.negf %93 : vector<2x128xf32>
    %95 = math.exp %94 : vector<2x128xf32>
    %cst_80 = arith.constant 1.000000e+00 : f32
    %96 = vector.broadcast %cst_80 : f32 to vector<2x128xf32>
    %97 = arith.addf %96, %95 : vector<2x128xf32>
    %98 = arith.divf %96, %97 : vector<2x128xf32>
    %c0_81 = arith.constant 0 : index
    %c2_82 = arith.constant 2 : index
    %c0_83 = arith.constant 0 : index
    %c0_84 = arith.constant 0 : index
    %99 = vector.load %arg5[%c0_81, %c2_82, %c0_83, %c0_84] : memref<1x3x2x128xf32, #tpu.memory_space<vmem>>, vector<1x1x2x128xf32>
    %100 = vector.shape_cast %99 : vector<1x1x2x128xf32> to vector<2x128xf32>
    %101 = vector.shape_cast %98 : vector<2x128xf32> to vector<1x1x2x128xf32>
    tpu.vector_store %arg5[%c0_81, %c2_82, %c0_83, %c0_84], %101 {strides = array<i32>} : memref<1x3x2x128xf32, #tpu.memory_space<vmem>>, vector<1x1x2x128xf32>,
    return
  }
  func.func @transform_0(%arg0: i32, %arg1: i32) -> (i32, i32) {
    %c0_i32 = arith.constant 0 : i32
    %c0_i32_0 = arith.constant 0 : i32
    %c0_i32_1 = arith.constant 0 : i32
    return %c0_i32, %c0_i32_0 : i32, i32
  }
  func.func @transform_1(%arg0: i32, %arg1: i32) -> i32 {
    %c0_i32 = arith.constant 0 : i32
    %c0_i32_0 = arith.constant 0 : i32
    return %c0_i32 : i32
  }
  func.func @transform_2(%arg0: i32, %arg1: i32) -> (i32, i32, i32, i32) {
    %c0_i32 = arith.constant 0 : i32
    %c0_i32_0 = arith.constant 0 : i32
    %c0_i32_1 = arith.constant 0 : i32
    return %arg1, %c0_i32, %arg0, %c0_i32_0 : i32, i32, i32, i32
  }
  func.func @transform_3(%arg0: i32, %arg1: i32) -> (i32, i32, i32, i32) {
    %c0_i32 = arith.constant 0 : i32
    %c0_i32_0 = arith.constant 0 : i32
    %c0_i32_1 = arith.constant 0 : i32
    return %arg1, %c0_i32, %arg0, %c0_i32_0 : i32, i32, i32, i32
  }
}

</mosaic_0001>

<llo_original>
// kernel: outconv_forward.1
$region0: #{outconv_forward.1}
  #allocation0 [shape = 'u32[]', space=smem, size = 0x4, offset = 0x4, fixed_abs, tag = 'smem constant byte address 0x4 - core index']
  #allocation1 [shape = 'u32[72,128]{1,0:T(1,128)}', space=vmem, size = 0x9000, scoped, tag = 'internal scratch']
  %s0 = inlined_call_operand.vmem [shape: f32[3,4], index: 0, kind: input, shape index: {}]
  %s1 = inlined_call_operand.vmem [shape: f32[3], index: 1, kind: input, shape index: {}]
  %s2 = inlined_call_operand.vmem [shape: f32[2,4,2,128], index: 2, kind: input, shape index: {}]
  %s3 = inlined_call_operand.vmem [shape: f32[2,3,2,128], index: 3, kind: output, shape index: {}]
  %s4 = sld [smem:[#allocation0]]
  $region53: #{outconv_forward.1} parent=0
    _
  %s6 = ssub.s32 1, %s4
  %s7 = scalar_select 0, %s6, %s4
  $region1: #{outconv_forward.1} parent=0
    #allocation2 [shape = 'u8[2048]{0}', space=smem, size = 0x800, scoped, tag = 'input window, operand 0, single buffered']
    #allocation3 [shape = 's32[2]{0}', space=sflag, size = 0x8, scoped, tag = 'scoped memory for outconv_forward.1']
    #allocation4 [shape = 'u8[512]{0}', space=smem, size = 0x200, scoped, tag = 'input window, operand 1, single buffered']
    #allocation5 [shape = 's32[1]{0}', space=sflag, size = 0x4, scoped, tag = 'scoped memory for outconv_forward.1']
    %8 = vsyncpa [#allocation3], 0
    %9 = vsyncpa [#allocation5], 0
    loop: start=0, step=1, limit=4
    $region2: #{outconv_forward.1} parent=1 // loop_pre_header
      _
    $region3: #{outconv_forward.1} parent=1 // loop_header
      %s11 = sphi 0, %s15
      %p12 = scmp.ge.s32.totalorder %s11, 4
      %s18 = sphi 0, %s30
      %s19 = sphi 0, %s26
      %s20 = sphi 0, %s18
      %s21 = sphi 0, %s19
      %s22 = sphi 0, %s20
      %s23 = sphi 0, %s21
      %s31 = sphi 0, %s31
      %s33 = sphi 0, %s31
      %s34 = sphi 0, %s33
      %s48 = sphi 0, %s34
      %s52 = sphi 0, %s52
      %s54 = sphi 0, %s52
      %s55 = sphi 0, %s54
      %s69 = sphi 0, %s55
      %s77 = sphi 0, %s79
      %s80 = sphi 0, %s77
      %s81 = sphi 0, %s80
      %s97 = sphi 0, %s81
      %s105 = sphi 0, %s107
      %s108 = sphi 0, %s105
      %s109 = sphi 0, %s108
      %s125 = sphi 0, %s109
    $region4: #{outconv_forward.1} parent=1 // loop_header_branch
      %14 = sbr.rel (%p12) target = $region8
    $region5: #{outconv_forward.1} parent=1 // loop_body
      %s16 = ssub.s32 %s11, 1
      %s17 = ssub.s32 %s11, 2
      %s24 = sadd.s32 1, %s19
      %p25 = scmp.ge.s32.totalorder %s24, 2
      %s26 = scalar_select %p25, 0, %s24
      %s27 = sadd.s32 1, %s18
      %s28 = scalar_select %p25, %s27, %s18
      %p29 = scmp.ge.s32.totalorder %s28, 1
      %s30 = scalar_select %p29, 0, %s28
      %s32 = sadd.s32 %s31, 1
      %p35 = scmp.eq.s32.totalorder %s11, 1
      %p36 = scmp.ne.s32.totalorder %s31, %s33
      %p37 = scmp.eq.s32.totalorder %s11, 0
      %p38 = por %p36, %p37
      %p39 = scmp.ne.s32.totalorder %s31, %s33
      %p40 = scmp.eq.s32.totalorder %s16, 1
      %p41 = por %p39, %p40
      %p42 = scmp.ne.s32.totalorder %s33, %s34
      %p43 = scmp.eq.s32.totalorder %s16, 0
      %p44 = por %p42, %p43
      %p45 = scmp.ne.s32.totalorder %s33, %s34
      %p46 = scmp.eq.s32.totalorder %s17, 1
      %p47 = por %p45, %p46
      %p49 = scmp.ne.s32.totalorder %s34, %s48
      %p50 = scmp.eq.s32.totalorder %s17, 0
      %p51 = por %p49, %p50
      %s53 = sadd.s32 %s52, 1
      %p56 = scmp.eq.s32.totalorder %s11, 1
      %p57 = scmp.ne.s32.totalorder %s52, %s54
      %p58 = scmp.eq.s32.totalorder %s11, 0
      %p59 = por %p57, %p58
      %p60 = scmp.ne.s32.totalorder %s52, %s54
      %p61 = scmp.eq.s32.totalorder %s16, 1
      %p62 = por %p60, %p61
      %p63 = scmp.ne.s32.totalorder %s54, %s55
      %p64 = scmp.eq.s32.totalorder %s16, 0
      %p65 = por %p63, %p64
      %p66 = scmp.ne.s32.totalorder %s54, %s55
      %p67 = scmp.eq.s32.totalorder %s17, 1
      %p68 = por %p66, %p67
      %p70 = scmp.ne.s32.totalorder %s55, %s69
      %p71 = scmp.eq.s32.totalorder %s17, 0
      %p72 = por %p70, %p71
      %s73 = ssub.s32 %s19, %s26
      %s74 = ssub.s32 %s18, %s30
      %s75 = sor.u32 %s73, %s74
      %p76 = scmp.eq.s32.totalorder %s75, 0
      %s78 = sadd.s32 %s77, 1
      %s79 = scalar_select %p76, %s77, %s78
      %p82 = pneg %p76
      %p83 = scmp.eq.s32.totalorder %s11, 1
      %p84 = por %p82, %p83
      %p85 = scmp.ne.s32.totalorder %s77, %s80
      %p86 = scmp.eq.s32.totalorder %s11, 0
      %p87 = por %p85, %p86
      %p88 = scmp.ne.s32.totalorder %s77, %s80
      %p89 = scmp.eq.s32.totalorder %s16, 1
      %p90 = por %p88, %p89
      %p91 = scmp.ne.s32.totalorder %s80, %s81
      %p92 = scmp.eq.s32.totalorder %s16, 0
      %p93 = por %p91, %p92
      %p94 = scmp.ne.s32.totalorder %s80, %s81
      %p95 = scmp.eq.s32.totalorder %s17, 1
      %p96 = por %p94, %p95
      %p98 = scmp.ne.s32.totalorder %s81, %s97
      %p99 = scmp.eq.s32.totalorder %s17, 0
      %p100 = por %p98, %p99
      %s101 = ssub.s32 %s19, %s26
      %s102 = ssub.s32 %s18, %s30
      %s103 = sor.u32 %s101, %s102
      %p104 = scmp.eq.s32.totalorder %s103, 0
      %s106 = sadd.s32 %s105, 1
      %s107 = scalar_select %p104, %s105, %s106
      %p110 = pneg %p104
      %p111 = scmp.eq.s32.totalorder %s11, 1
      %p112 = por %p110, %p111
      %p113 = scmp.ne.s32.totalorder %s105, %s108
      %p114 = scmp.eq.s32.totalorder %s11, 0
      %p115 = por %p113, %p114
      %p116 = scmp.ne.s32.totalorder %s105, %s108
      %p117 = scmp.eq.s32.totalorder %s16, 1
      %p118 = por %p116, %p117
      %p119 = scmp.ne.s32.totalorder %s108, %s109
      %p120 = scmp.eq.s32.totalorder %s16, 0
      %p121 = por %p119, %p120
      %p122 = scmp.ne.s32.totalorder %s108, %s109
      %p123 = scmp.eq.s32.totalorder %s17, 1
      %p124 = por %p122, %p123
      %p126 = scmp.ne.s32.totalorder %s109, %s125
      %p127 = scmp.eq.s32.totalorder %s17, 0
      %p128 = por %p126, %p127
      %p129 = scmp.le.s32.totalorder 1, %s11
      %p130 = scmp.lt.s32.totalorder %s11, 3
      %p131 = pnand %p129, %p130
      %p132 = pneg %p131
      // Predicated region
      $region9: #{outconv_forward.1} parent=5 // pred_check
        _
      $region10: #{outconv_forward.1} parent=5 // pred_check_branch
        %134 = sbr.rel (%p131) target = $region12
      $region11: #{outconv_forward.1} parent=5 // pred_region
        %s135 = ssub.s32 %s11, 1
        // Predicated region
        $region13: #{outconv_forward.1} parent=11 // pred_check
          %p136 = pneg %p44
        $region14: #{outconv_forward.1} parent=11 // pred_check_branch
          %138 = sbr.rel (%p136) target = $region16
        $region15: #{outconv_forward.1} parent=11 // pred_region
          %140 = vsyncadd [#allocation3], 0
          %s142 = sshll.u32 %s0, 4
          %s143 = int_to_ptr.vmem [resolvable:$true] %s142
          %145 = dma.vmem_to_smem %s143, 64, [#allocation2], [#allocation3]
        $region16: #{outconv_forward.1} parent=11 // pred_fallthru
          _
        // Predicated region
        $region17: #{outconv_forward.1} parent=11 // pred_check
          %p146 = pneg %p65
        $region18: #{outconv_forward.1} parent=11 // pred_check_branch
          %148 = sbr.rel (%p146) target = $region20
        $region19: #{outconv_forward.1} parent=11 // pred_region
          %150 = vsyncadd [#allocation5], 0
          %s152 = sshll.u32 %s1, 4
          %s153 = int_to_ptr.vmem [resolvable:$true] %s152
          %155 = dma.vmem_to_smem %s153, 16, [#allocation4], [#allocation5]
        $region20: #{outconv_forward.1} parent=11 // pred_fallthru
          _
      $region12: #{outconv_forward.1} parent=5 // pred_fallthru
        _
      %p156 = scmp.lt.s32.totalorder %s11, 2
      // Predicated region
      $region21: #{outconv_forward.1} parent=5 // pred_check
        %p157 = pneg %p156
      $region22: #{outconv_forward.1} parent=5 // pred_check_branch
        %159 = sbr.rel (%p157) target = $region24
      $region23: #{outconv_forward.1} parent=5 // pred_region
        // Predicated region
        $region25: #{outconv_forward.1} parent=23 // pred_check
          %p160 = pneg %p87
        $region26: #{outconv_forward.1} parent=23 // pred_check_branch
          %162 = sbr.rel (%p160) target = $region28
        $region27: #{outconv_forward.1} parent=23 // pred_region
          %p163 = scmp.lt.s32.totalorder %s19, 1
          %s164 = scalar_select %p163, %s19, 1
          %p165 = scmp.lt.s32.totalorder %s18, 0
          %s166 = scalar_select %p165, %s18, 0
          %s167 = smul.addr %s164, 4
          %s168 = sadd.s32 %s166, %s167
          %s169 = smul.addr %s168, 2
          %s170 = scalar_lea.vmem %s2, %s169
        $region28: #{outconv_forward.1} parent=23 // pred_fallthru
          _
      $region24: #{outconv_forward.1} parent=5 // pred_fallthru
        _
      %p171 = scmp.le.s32.totalorder 1, %s11
      %p172 = scmp.lt.s32.totalorder %s11, 3
      %p173 = pnand %p171, %p172
      %p174 = pneg %p173
      // Predicated region
      $region29: #{outconv_forward.1} parent=5 // pred_check
        _
      $region30: #{outconv_forward.1} parent=5 // pred_check_branch
        %176 = sbr.rel (%p173) target = $region32
      $region31: #{outconv_forward.1} parent=5 // pred_region
        %s177 = ssub.s32 %s11, 1
        // Predicated region
        $region33: #{outconv_forward.1} parent=31 // pred_check
          %p178 = pneg %p44
        $region34: #{outconv_forward.1} parent=31 // pred_check_branch
          %180 = sbr.rel (%p178) target = $region36
        $region35: #{outconv_forward.1} parent=31 // pred_region
          %182 = dma.done [#allocation3], 64
        $region36: #{outconv_forward.1} parent=31 // pred_fallthru
          _
        // Predicated region
        $region37: #{outconv_forward.1} parent=31 // pred_check
          %p183 = pneg %p65
        $region38: #{outconv_forward.1} parent=31 // pred_check_branch
          %185 = sbr.rel (%p183) target = $region40
        $region39: #{outconv_forward.1} parent=31 // pred_region
          %187 = dma.done [#allocation5], 16
        $region40: #{outconv_forward.1} parent=31 // pred_fallthru
          _
        %188 = sfence
        %p189 = pneg %p44
        %p190 = pneg %p41
        %p191 = pneg %p65
        %p192 = pneg %p62
        %p193 = scmp.lt.s32.totalorder %s21, 1
        %s194 = scalar_select %p193, %s21, 1
        %p195 = scmp.lt.s32.totalorder %s20, 0
        %s196 = scalar_select %p195, %s20, 0
        %s197 = smul.addr %s194, 4
        %s198 = sadd.s32 %s196, %s197
        %s199 = smul.addr %s198, 2
        %s200 = scalar_lea.vmem %s2, %s199
        %p201 = pneg %p93
        %p202 = pneg %p90
        %p203 = pneg %p121
        %p204 = pneg %p118
        %p205 = scmp.lt.s32.totalorder %s21, 1
        %s206 = scalar_select %p205, %s21, 1
        %p207 = scmp.lt.s32.totalorder %s20, 0
        %s208 = scalar_select %p207, %s20, 0
        %s209 = smul.addr %s206, 3
        %s210 = sadd.s32 %s208, %s209
        %s211 = smul.addr %s210, 2
        %s212 = scalar_lea.vmem %s3, %s211
        %p213 = scmp.lt.s32.totalorder %s21, 1
        %s214 = scalar_select %p213, %s21, 1
        %p215 = scmp.lt.s32.totalorder %s20, 0
        %s216 = scalar_select %p215, %s20, 0
        %s217 = smul.addr %s214, 4
        %s218 = sadd.s32 %s216, %s217
        %s219 = smul.addr %s218, 2
        %s220 = scalar_lea.vmem %s2, %s219
        %p221 = scmp.lt.s32.totalorder %s21, 1
        %s222 = scalar_select %p221, %s21, 1
        %p223 = scmp.lt.s32.totalorder %s20, 0
        %s224 = scalar_select %p223, %s20, 0
        %s225 = smul.addr %s222, 3
        %s226 = sadd.s32 %s224, %s225
        %s227 = smul.addr %s226, 2
        %s228 = scalar_lea.vmem %s3, %s227
        %v229 = vld [vmem:[%s220] sm:$0x3]
        %s230 = sld [smem:[#allocation2]]
        %v231 = vstv %s230
        %v232 = vmul.f32 %v229, %v231
        %s233 = sld [smem:[#allocation4]]
        %v234 = vstv %s233
        %v235 = vadd.f32 %v232, %v234
        %s236 = scalar_lea.vmem %s220, 2
        %v237 = vld [vmem:[%s236] sm:$0x3]
        %s238 = sld [smem:[#allocation2 + $0x1]]
        %v239 = vstv %s238
        %v240 = vmul.f32 %v237, %v239
        %v241 = vadd.f32 %v235, %v240
        %s242 = scalar_lea.vmem %s220, 4
        %v243 = vld [vmem:[%s242] sm:$0x3]
        %s244 = sld [smem:[#allocation2 + $0x2]]
        %v245 = vstv %s244
        %v246 = vmul.f32 %v243, %v245
        %v247 = vadd.f32 %v241, %v246
        %s248 = scalar_lea.vmem %s220, 6
        %v249 = vld [vmem:[%s248] sm:$0x3]
        %s250 = sld [smem:[#allocation2 + $0x3]]
        %v251 = vstv %s250
        %v252 = vmul.f32 %v249, %v251
        %v253 = vadd.f32 %v247, %v252
        %v254 = vxor.u32 %v253, 2147483648
        %v255 = vmul.f32 %v254, 1.442695
        %v256 = vpow.pop %v255
        %v257 = vadd.f32 %v256, 1.0
        %v258 = vrcp.pop %v257
        %v259 = vmul.f32 %v257, %v258
        %v260 = vsub.f32 1.0, %v259
        %v261 = vmul.f32 %v258, %v260
        %v262 = vadd.f32 %v258, %v261
        %vm263 = vweird.f32 %v257
        %vm264 = vweird.f32 %v258
        %vm265 = vmor %vm263, %vm264
        %v266 = vsel %vm265, %v258, %v262
        %v267 = vand.u32 2147483647, %v257
        %vm268 = vcmp.eq.f32.partialorder %v267, 8.507059e+37
        %v269 = vand.u32 %v257, 2147483648
        %v270 = vor.u32 1.1754944e-38, %v269
        %v271 = vsel %vm268, %v270, %v266
        %v272 = vmul.f32 1.0, %v271
        %273 = vst [vmem:[%s228] sm:$0x3] %v272
        %v274 = vld [vmem:[%s220] sm:$0x3]
        %s275 = sld [smem:[#allocation2 + $0x80]]
        %v276 = vstv %s275
        %v277 = vmul.f32 %v274, %v276
        %s278 = sld [smem:[#allocation4 + $0x1]]
        %v279 = vstv %s278
        %v280 = vadd.f32 %v277, %v279
        %v281 = vld [vmem:[%s236] sm:$0x3]
        %s282 = sld [smem:[#allocation2 + $0x81]]
        %v283 = vstv %s282
        %v284 = vmul.f32 %v281, %v283
        %v285 = vadd.f32 %v280, %v284
        %v286 = vld [vmem:[%s242] sm:$0x3]
        %s287 = sld [smem:[#allocation2 + $0x82]]
        %v288 = vstv %s287
        %v289 = vmul.f32 %v286, %v288
        %v290 = vadd.f32 %v285, %v289
        %v291 = vld [vmem:[%s248] sm:$0x3]
        %s292 = sld [smem:[#allocation2 + $0x83]]
        %v293 = vstv %s292
        %v294 = vmul.f32 %v291, %v293
        %v295 = vadd.f32 %v290, %v294
        %v296 = vxor.u32 %v295, 2147483648
        %v297 = vmul.f32 %v296, 1.442695
        %v298 = vpow.pop %v297
        %v299 = vadd.f32 %v298, 1.0
        %v300 = vrcp.pop %v299
        %v301 = vmul.f32 %v299, %v300
        %v302 = vsub.f32 1.0, %v301
        %v303 = vmul.f32 %v300, %v302
        %v304 = vadd.f32 %v300, %v303
        %vm305 = vweird.f32 %v299
        %vm306 = vweird.f32 %v300
        %vm307 = vmor %vm305, %vm306
        %v308 = vsel %vm307, %v300, %v304
        %v309 = vand.u32 2147483647, %v299
        %vm310 = vcmp.eq.f32.partialorder %v309, 8.507059e+37
        %v311 = vand.u32 %v299, 2147483648
        %v312 = vor.u32 1.1754944e-38, %v311
        %v313 = vsel %vm310, %v312, %v308
        %v314 = vmul.f32 1.0, %v313
        %s315 = scalar_lea.vmem %s228, 2
        %316 = vst [vmem:[%s315] sm:$0x3] %v314
        %v317 = vld [vmem:[%s220] sm:$0x3]
        %s318 = sld [smem:[#allocation2 + $0x100]]
        %v319 = vstv %s318
        %v320 = vmul.f32 %v317, %v319
        %s321 = sld [smem:[#allocation4 + $0x2]]
        %v322 = vstv %s321
        %v323 = vadd.f32 %v320, %v322
        %v324 = vld [vmem:[%s236] sm:$0x3]
        %s325 = sld [smem:[#allocation2 + $0x101]]
        %v326 = vstv %s325
        %v327 = vmul.f32 %v324, %v326
        %v328 = vadd.f32 %v323, %v327
        %v329 = vld [vmem:[%s242] sm:$0x3]
        %s330 = sld [smem:[#allocation2 + $0x102]]
        %v331 = vstv %s330
        %v332 = vmul.f32 %v329, %v331
        %v333 = vadd.f32 %v328, %v332
        %v334 = vld [vmem:[%s248] sm:$0x3]
        %s335 = sld [smem:[#allocation2 + $0x103]]
        %v336 = vstv %s335
        %v337 = vmul.f32 %v334, %v336
        %v338 = vadd.f32 %v333, %v337
        %v339 = vxor.u32 %v338, 2147483648
        %v340 = vmul.f32 %v339, 1.442695
        %v341 = vpow.pop %v340
        %v342 = vadd.f32 %v341, 1.0
        %v343 = vrcp.pop %v342
        %v344 = vmul.f32 %v342, %v343
        %v345 = vsub.f32 1.0, %v344
        %v346 = vmul.f32 %v343, %v345
        %v347 = vadd.f32 %v343, %v346
        %vm348 = vweird.f32 %v342
        %vm349 = vweird.f32 %v343
        %vm350 = vmor %vm348, %vm349
        %v351 = vsel %vm350, %v343, %v347
        %v352 = vand.u32 2147483647, %v342
        %vm353 = vcmp.eq.f32.partialorder %v352, 8.507059e+37
        %v354 = vand.u32 %v342, 2147483648
        %v355 = vor.u32 1.1754944e-38, %v354
        %v356 = vsel %vm353, %v355, %v351
        %v357 = vmul.f32 1.0, %v356
        %s358 = scalar_lea.vmem %s228, 4
        %359 = vst [vmem:[%s358] sm:$0x3] %v357
        %p360 = scmp.lt.s32.totalorder %s21, 1
        %s361 = scalar_select %p360, %s21, 1
        %p362 = scmp.lt.s32.totalorder %s20, 0
        %s363 = scalar_select %p362, %s20, 0
        %s364 = smul.addr %s361, 3
        %s365 = sadd.s32 %s363, %s364
        %s366 = smul.addr %s365, 2
        %s367 = scalar_lea.vmem %s3, %s366
        // Predicated region
        $region41: #{outconv_forward.1} parent=31 // pred_check
          %p368 = pneg %p118
        $region42: #{outconv_forward.1} parent=31 // pred_check_branch
          %370 = sbr.rel (%p368) target = $region44
        $region43: #{outconv_forward.1} parent=31 // pred_region
          _
        $region44: #{outconv_forward.1} parent=31 // pred_fallthru
          _
      $region32: #{outconv_forward.1} parent=5 // pred_fallthru
        _
      %p371 = scmp.le.s32.totalorder 2, %s11
      // Predicated region
      $region45: #{outconv_forward.1} parent=5 // pred_check
        %p372 = pneg %p371
      $region46: #{outconv_forward.1} parent=5 // pred_check_branch
        %374 = sbr.rel (%p372) target = $region48
      $region47: #{outconv_forward.1} parent=5 // pred_region
        %s375 = ssub.s32 %s11, 2
        // Predicated region
        $region49: #{outconv_forward.1} parent=47 // pred_check
          %p376 = pneg %p124
        $region50: #{outconv_forward.1} parent=47 // pred_check_branch
          %378 = sbr.rel (%p376) target = $region52
        $region51: #{outconv_forward.1} parent=47 // pred_region
          %p379 = scmp.lt.s32.totalorder %s23, 1
          %s380 = scalar_select %p379, %s23, 1
          %p381 = scmp.lt.s32.totalorder %s22, 0
          %s382 = scalar_select %p381, %s22, 0
          %s383 = smul.addr %s380, 3
          %s384 = sadd.s32 %s382, %s383
          %s385 = smul.addr %s384, 2
          %s386 = scalar_lea.vmem %s3, %s385
        $region52: #{outconv_forward.1} parent=47 // pred_fallthru
          _
      $region48: #{outconv_forward.1} parent=5 // pred_fallthru
        _
    $region6: #{outconv_forward.1} parent=1 // loop_footer
      %s15 = sadd.s32 1, %s11
    $region7: #{outconv_forward.1} parent=1 // loop_footer_branch
      %10 = sbr.rel target = $region3
    $region8: #{outconv_forward.1} parent=1 // loop_exit
      _
    %387 = vsyncpa [#allocation3], 1
    %s388 = scalar_lea.sflag [#allocation3], 1
    %389 = vsyncpa %s388, 1
    %390 = vsyncpa [#allocation5], 1

</llo_original>
